<compile_context>
chip_gen: v6e
topology: v6e:2x2x1
jax: 0.10.0
libtpu: 0.0.40
codegen_flags: <defaults>
</compile_context>

<pallas_src>
import jax
import jax.numpy as jnp
from jax.experimental import pallas as pl
from jax.experimental.pallas import tpu as pltpu


# Default entity-tile width (multiple of 128).  int8 (400, 8192) tile ~3.3 MB;
# double-buffered stream + bf16 dequant intermediate + (B, TE) output buffers
# fit comfortably inside every generation's VMEM (incl. v7x 64 MiB per TC).
# On v5e/v6e (128 MiB VMEM) te=16384 can be passed explicitly for fewer,
# larger grid steps.
_DEFAULT_TE = 8192


def _sigmoid(x):
    # exp on the EUP; approximate reciprocal also on the EUP (vrcp) -> keeps
    # the VPU divide off the critical slot once B / TE grow.
    return pl.reciprocal(1.0 + jnp.exp(-x), approx=True)


def _score_kernel_q(s_ref, t_ref, scale_ref, out_ref):
    # s_ref:     (Bp, 400) bf16, resident across all E tiles (constant index_map).
    # t_ref:     (400, TE) int8 streamed tile of the pre-transposed entity table.
    # scale_ref: (1, TE)   f32 per-entity dequantization scale.
    # out_ref:   (Bp, TE)  bf16/f32 sigmoid scores.
    t = t_ref[...].astype(jnp.bfloat16)          # |q| <= 127 -> exact in bf16
    score = jnp.dot(s_ref[...], t, preferred_element_type=jnp.float32)
    score = score * scale_ref[...]               # broadcast (1, TE) over Bp rows
    out_ref[...] = _sigmoid(score).astype(out_ref.dtype)


def _score_kernel(s_ref, t_ref, out_ref):
    # Un-quantized fallback: bf16 table streamed directly.
    score = jnp.dot(s_ref[...], t_ref[...], preferred_element_type=jnp.float32)
    out_ref[...] = _sigmoid(score).astype(out_ref.dtype)


def _vmem_limit_bytes(B, D, te, table_itemsize, out_itemsize, quantized):
    table = 2 * D * te * table_itemsize            # double-buffered streamed tile
    dequant = D * te * 2 if quantized else 0       # in-kernel int8 -> bf16 tile
    out = 2 * B * te * out_itemsize                # double-buffered output tile
    scale = 2 * te * 4 if quantized else 0         # (1, TE) f32 scale row
    s_res = 2 * B * D * 2                          # resident bf16 query block
    total = table + dequant + out + scale + s_res + (8 << 20)   # headroom
    # Floor at the smallest default scoped limit; cap so a big-te config tuned
    # on v5e/v6e (128 MiB VMEM) cannot blow v7x's 64 MiB per-TC budget.
    return int(min(max(total, 16 << 20), 48 << 20))


def complex_score(s, table_t, scale=None, *, te=None, out_dtype=jnp.bfloat16):
    """s: (B, 2*Dh) complex-product query (bf16); table_t: (2*Dh, E) transposed
    entity table (int8 if `scale` is given, else bf16); scale: (1, E) f32 or None."""
    B, D = s.shape
    Dt, E = table_t.shape
    assert D == Dt
    if te is None:
        te = E if E <= _DEFAULT_TE else _DEFAULT_TE
    grid = (pl.cdiv(E, te),)
    quantized = scale is not None
    out_itemsize = jnp.dtype(out_dtype).itemsize
    params = pltpu.CompilerParams(
        # E tiles are independent -> shard across TensorCores (megacore / v7x 2-TC).
        dimension_semantics=("parallel",),
        vmem_limit_bytes=_vmem_limit_bytes(
            B, D, te, table_t.dtype.itemsize, out_itemsize, quantized),
    )
    out_shape = jax.ShapeDtypeStruct((B, E), out_dtype)
    out_spec = pl.BlockSpec((B, te), lambda e: (0, e))
    if quantized:
        return pl.pallas_call(
            _score_kernel_q,
            out_shape=out_shape,
            grid=grid,
            in_specs=[
                pl.BlockSpec((B, D), lambda e: (0, 0)),     # s resident in VMEM
                pl.BlockSpec((D, te), lambda e: (0, e)),    # stream int8 table tiles
                pl.BlockSpec((1, te), lambda e: (0, e)),    # stream per-entity scales
            ],
            out_specs=out_spec,
            compiler_params=params,
        )(s, table_t, scale)
    return pl.pallas_call(
        _score_kernel,
        out_shape=out_shape,
        grid=grid,
        in_specs=[
            pl.BlockSpec((B, D), lambda e: (0, 0)),
            pl.BlockSpec((D, te), lambda e: (0, e)),
        ],
        out_specs=out_spec,
        compiler_params=params,
    )(s, table_t)


class Embeddings:
    """JAX/Pallas port of the PyTorch Embeddings module (ComplEx forward pass only)."""

    def __init__(self, num_entities, num_relations, dim=400, key=None, te=None,
                 quantize=True, out_dtype=jnp.bfloat16):
        assert dim % 2 == 0
        self.dim = dim
        self.te = te
        self.quantize = quantize
        self.out_dtype = out_dtype
        if key is None:
            key = jax.random.PRNGKey(0)
        k_e, k_r = jax.random.split(key)
        # xavier_normal_ for an (N, dim) weight: std = sqrt(2 / (N + dim))
        std_e = (2.0 / (num_entities + dim)) ** 0.5
        std_r = (2.0 / (num_relations + dim)) ** 0.5
        ent_w = jax.random.normal(k_e, (num_entities, dim), jnp.float32) * std_e
        rel_w = jax.random.normal(k_r, (num_relations, dim), jnp.float32) * std_r
        # padding_idx=0 -> row 0 is zeros
        self.entity_weight = ent_w.at[0].set(0.0)      # (E, 400) f32, for lookups
        self.relation_weight = rel_w.at[0].set(0.0)    # (R, 400) f32, for lookups

        # Pre-transposed scoring table (400, E) built once at init.
        table_t = self.entity_weight.T
        if quantize:
            # Symmetric int8 with one f32 scale per entity (per column): halves
            # the dominant HBM stream on every generation; dequantized to bf16
            # on-chip so no integer-MXU dependence (v7x-safe).
            max_abs = jnp.max(jnp.abs(table_t), axis=0, keepdims=True)      # (1, E)
            scale = jnp.where(max_abs > 0.0, max_abs / 127.0, 1.0)
            self.entity_table = jnp.clip(
                jnp.round(table_t / scale), -127.0, 127.0).astype(jnp.int8)  # (400, E)
            self.entity_scale = scale.astype(jnp.float32)                    # (1, E)
        else:
            self.entity_table = table_t.astype(jnp.bfloat16)
            self.entity_scale = None
        # TODO(synk): cLoss (log_softmax NLL) is training-time only and not part of
        # the forward pass; not implemented as a Pallas kernel here.

    def __call__(self, entity_idx, relation_idx):
        dh = self.dim // 2
        head = jnp.take(self.entity_weight, entity_idx, axis=0)      # (B, 400)
        rel = jnp.take(self.relation_weight, relation_idx, axis=0)   # (B, 400)
        re_h, im_h = head[:, :dh], head[:, dh:]
        re_r, im_r = rel[:, :dh], rel[:, dh:]
        # Complex product computed once per call in f32 (safe on v5e: no bf16 VPU),
        # tiny (B, 400); cast to bf16 only for the MXU dot.
        re_s = re_h * re_r - im_h * im_r
        im_s = re_h * im_r + im_h * re_r
        s = jnp.concatenate([re_s, im_s], axis=1).astype(jnp.bfloat16)
        # Pad batch so output stores stay unmasked (8 sublanes f32 / 16 bf16).
        B = s.shape[0]
        pad_to = 8 * (4 // jnp.dtype(self.out_dtype).itemsize)
        B_pad = ((B + pad_to - 1) // pad_to) * pad_to
        if B_pad != B:
            s = jnp.pad(s, ((0, B_pad - B), (0, 0)))
        out = complex_score(s, self.entity_table, self.entity_scale,
                            te=self.te, out_dtype=self.out_dtype)    # (B_pad, E)
        return out[:B]


def _reference(model, entity_idx, relation_idx):
    # Mirrors the kernel's bf16 / int8-dequant / output casts so tolerances
    # only have to absorb the approx-reciprocal sigmoid and f32 accumulation order.
    dh = model.dim // 2
    head = jnp.take(model.entity_weight, entity_idx, axis=0)
    rel = jnp.take(model.relation_weight, relation_idx, axis=0)
    re_h, im_h = head[:, :dh], head[:, dh:]
    re_r, im_r = rel[:, :dh], rel[:, dh:]
    re_s = re_h * re_r - im_h * im_r
    im_s = re_h * im_r + im_h * re_r
    s = jnp.concatenate([re_s, im_s], axis=1).astype(jnp.bfloat16).astype(jnp.float32)
    t = model.entity_table.astype(jnp.float32)
    score = s @ t
    if model.entity_scale is not None:
        score = score * model.entity_scale
    out = jax.nn.sigmoid(score)
    return out.astype(model.out_dtype).astype(jnp.float32)


if __name__ == "__main__":
    key = jax.random.PRNGKey(0)
    k1, k2, k3, k_e, k_r = jax.random.split(key, 5)

    batch = 8
    num_relations = 16
    relation_idx = jax.random.randint(k_r, (batch,), 0, num_relations, jnp.int32)

    # Case 1: single E tile (TE == E), int8 table, f32 output (tight tolerance;
    # only approx-reciprocal sigmoid + accumulation-order noise).
    E1 = 64
    m1 = Embeddings(E1, num_relations, dim=400, key=k1, quantize=True,
                    out_dtype=jnp.float32)
    e_idx1 = jax.random.randint(k_e, (batch,), 0, E1, jnp.int32)
    out1 = jax.block_until_ready(m1(e_idx1, relation_idx))
    ref1 = _reference(m1, e_idx1, relation_idx)
    assert out1.shape == (batch, E1)
    assert jnp.allclose(out1, ref1, atol=2e-3, rtol=0.0), \
        float(jnp.max(jnp.abs(out1 - ref1)))

    # Case 2: multi-tile grid (E=384, TE=128 -> 3 grid steps), int8 table,
    # bf16 output (tolerance also absorbs bf16 output rounding ~2^-9).
    E2 = 384
    m2 = Embeddings(E2, num_relations, dim=400, key=k2, te=128, quantize=True,
                    out_dtype=jnp.bfloat16)
    e_idx2 = jax.random.randint(k_e, (batch,), 0, E2, jnp.int32)
    out2 = jax.block_until_ready(m2(e_idx2, relation_idx)).astype(jnp.float32)
    ref2 = _reference(m2, e_idx2, relation_idx)
    assert out2.shape == (batch, E2)
    assert jnp.allclose(out2, ref2, atol=6e-3, rtol=0.0), \
        float(jnp.max(jnp.abs(out2 - ref2)))

    # Case 3: ragged last E tile (E=384, TE=256 -> last tile half-full) to verify
    # Pallas edge masking on the streamed table / scales / output.
    m3 = Embeddings(E2, num_relations, dim=400, key=k2, te=256, quantize=True,
                    out_dtype=jnp.bfloat16)
    out3 = jax.block_until_ready(m3(e_idx2, relation_idx)).astype(jnp.float32)
    ref3 = _reference(m3, e_idx2, relation_idx)
    assert out3.shape == (batch, E2)
    assert jnp.allclose(out3, ref3, atol=6e-3, rtol=0.0), \
        float(jnp.max(jnp.abs(out3 - ref3)))

    # Case 4: un-quantized bf16-table fallback path.
    m4 = Embeddings(E1, num_relations, dim=400, key=k3, quantize=False,
                    out_dtype=jnp.float32)
    e_idx4 = jax.random.randint(k_e, (batch,), 0, E1, jnp.int32)
    out4 = jax.block_until_ready(m4(e_idx4, relation_idx))
    ref4 = _reference(m4, e_idx4, relation_idx)
    assert out4.shape == (batch, E1)
    assert jnp.allclose(out4, ref4, atol=2e-3, rtol=0.0), \
        float(jnp.max(jnp.abs(out4 - ref4)))

    print("KERNEL_OK")
</pallas_src>

<mosaic_0001>
module attributes {stable_mosaic.version = 11 : i64} {
  func.func @_score_kernel_q(%arg0: i32, %arg1: memref<8x400xbf16, #tpu.memory_space<vmem>>, %arg2: memref<400x64xi8, #tpu.memory_space<vmem>>, %arg3: memref<1x64xf32, #tpu.memory_space<vmem>>, %arg4: memref<8x64xf32, #tpu.memory_space<vmem>>) attributes {dimension_semantics = [#tpu.dimension_semantics<parallel>], iteration_bounds = array<i64: 1>, scalar_prefetch = 0 : i64, scratch_operands = 0 : i64, tpu.core_type = #tpu.core_type<tc>, window_params = [{pipeline_mode = #tpu.pipeline_mode<synchronous>, transform_indices = @transform_0, window_bounds = array<i64: 8, 400>}, {transform_indices = @transform_1, window_bounds = array<i64: 400, 64>}, {transform_indices = @transform_2, window_bounds = array<i64: 1, 64>}, {transform_indices = @transform_3, window_bounds = array<i64: 8, 64>}]} {
    %c0 = arith.constant 0 : index
    %c0_0 = arith.constant 0 : index
    %0 = vector.load %arg2[%c0, %c0_0] : memref<400x64xi8, #tpu.memory_space<vmem>>, vector<400x64xi8>
    %1 = arith.sitofp %0 : vector<400x64xi8> to vector<400x64xbf16>
    %c0_1 = arith.constant 0 : index
    %c0_2 = arith.constant 0 : index
    %2 = vector.load %arg1[%c0_1, %c0_2] : memref<8x400xbf16, #tpu.memory_space<vmem>>, vector<8x400xbf16>
    %cst = arith.constant dense<0.000000e+00> : vector<8x64xf32>
    %3 = tpu.matmul %2, %1, %cst {dimension_numbers = #tpu.dot_dimension_numbers<[1], [0], [0], [1], [0, 0, 1, 1], [], []>} : vector<8x400xbf16>, vector<400x64xbf16>, vector<8x64xf32> -> vector<8x64xf32>
    %c0_3 = arith.constant 0 : index
    %c0_4 = arith.constant 0 : index
    %4 = vector.load %arg3[%c0_3, %c0_4] : memref<1x64xf32, #tpu.memory_space<vmem>>, vector<1x64xf32>
    %5 = vector.broadcast %4 : vector<1x64xf32> to vector<8x64xf32>
    %6 = arith.mulf %3, %5 : vector<8x64xf32>
    %cst_5 = arith.constant 0.000000e+00 : f32
    %7 = vector.broadcast %cst_5 : f32 to vector<8x64xf32>
    %8 = arith.subf %7, %6 : vector<8x64xf32>
    %9 = math.exp %8 : vector<8x64xf32>
    %cst_6 = arith.constant 1.000000e+00 : f32
    %10 = vector.broadcast %cst_6 : f32 to vector<8x64xf32>
    %11 = arith.addf %10, %9 : vector<8x64xf32>
    %12 = tpu.reciprocal %11 {approx = true} : vector<8x64xf32> -> vector<8x64xf32>
    %c0_7 = arith.constant 0 : index
    %c0_8 = arith.constant 0 : index
    %13 = vector.load %arg4[%c0_7, %c0_8] : memref<8x64xf32, #tpu.memory_space<vmem>>, vector<8x64xf32>
    tpu.vector_store %arg4[%c0_7, %c0_8], %12 {strides = array<i32>} : memref<8x64xf32, #tpu.memory_space<vmem>>, vector<8x64xf32>,
    return
  }
  func.func @transform_0(%arg0: i32) -> (i32, i32) {
    %c0_i32 = arith.constant 0 : i32
    %c0_i32_0 = arith.constant 0 : i32
    %c0_i32_1 = arith.constant 0 : i32
    return %c0_i32, %c0_i32_0 : i32, i32
  }
  func.func @transform_1(%arg0: i32) -> (i32, i32) {
    %c0_i32 = arith.constant 0 : i32
    %c0_i32_0 = arith.constant 0 : i32
    return %c0_i32, %arg0 : i32, i32
  }
  func.func @transform_2(%arg0: i32) -> (i32, i32) {
    %c0_i32 = arith.constant 0 : i32
    %c0_i32_0 = arith.constant 0 : i32
    return %c0_i32, %arg0 : i32, i32
  }
  func.func @transform_3(%arg0: i32) -> (i32, i32) {
    %c0_i32 = arith.constant 0 : i32
    %c0_i32_0 = arith.constant 0 : i32
    return %c0_i32, %arg0 : i32, i32
  }
}

</mosaic_0001>

<llo_original>
// kernel: tpu_custom_call.1
$region0: #{tpu_custom_call.1}
  #allocation0 [shape = 'u32[]', space=smem, size = 0x4, offset = 0x4, fixed_abs, tag = 'smem constant byte address 0x4 - core index']
  #allocation1 [shape = 'u32[144,128]{1,0:T(1,128)}', space=vmem, size = 0x12000, scoped, tag = 'internal scratch']
  %s0 = inlined_call_operand.vmem [shape: bf16[8,400], index: 0, kind: input, shape index: {}]
  %s1 = inlined_call_operand.vmem [shape: s8[400,64], index: 1, kind: input, shape index: {}]
  %s2 = inlined_call_operand.vmem [shape: f32[1,64], index: 2, kind: input, shape index: {}]
  %s3 = inlined_call_operand.hbm [shape: f32[8,64], index: 3, kind: output, shape index: {}]
  %s4 = sld [smem:[#allocation0]]
  $region22: #{tpu_custom_call.1} parent=0
    _
  %s6 = ssub.s32 1, %s4
  %s7 = scalar_select 0, %s6, %s4
  $region1: #{tpu_custom_call.1} parent=0
    #allocation2 [shape = 'u8[4096]{0}', space=vmem, size = 0x1000, scoped, tag = 'output window, operand 0, single buffered']
    #allocation3 [shape = 's32[1]{0}', space=sflag, size = 0x4, scoped, tag = 'scoped memory for tpu_custom_call.1']
    %8 = vsyncpa [#allocation3], 0
    // Predicated region
    $region2: #{tpu_custom_call.1} parent=1 // pred_check
      _
    $region3: #{tpu_custom_call.1} parent=1 // pred_check_branch
      %10 = sbr.rel (0) target = $region5
    $region4: #{tpu_custom_call.1} parent=1 // pred_region
      _
    $region5: #{tpu_custom_call.1} parent=1 // pred_fallthru
      _
    // Predicated region
    $region6: #{tpu_custom_call.1} parent=1 // pred_check
      _
    $region7: #{tpu_custom_call.1} parent=1 // pred_check_branch
      %12 = sbr.rel (0) target = $region9
    $region8: #{tpu_custom_call.1} parent=1 // pred_region
      _
    $region9: #{tpu_custom_call.1} parent=1 // pred_fallthru
      _
    // Predicated region
    $region10: #{tpu_custom_call.1} parent=1 // pred_check
      _
    $region11: #{tpu_custom_call.1} parent=1 // pred_check_branch
      %14 = sbr.rel (0) target = $region13
    $region12: #{tpu_custom_call.1} parent=1 // pred_region
      _
    $region13: #{tpu_custom_call.1} parent=1 // pred_fallthru
      _
    %v16 = vld [vmem:[%s1] sm:$0x3]
    %v17 = vld [vmem:[%s1 + $0x2] sm:$0x3]
    %v18 = vld [vmem:[%s1 + $0x4] sm:$0x3]
    %v19 = vld [vmem:[%s1 + $0x6] sm:$0x3]
    %v20 = vld [vmem:[%s1 + $0x8] sm:$0x3]
    %v21 = vld [vmem:[%s1 + $0xa] sm:$0x3]
    %v22 = vld [vmem:[%s1 + $0xc] sm:$0x3]
    %v23 = vld [vmem:[%s1 + $0xe] sm:$0x3]
    %v24 = vld [vmem:[%s1 + $0x10] sm:$0x3]
    %v25 = vld [vmem:[%s1 + $0x12] sm:$0x3]
    %v26 = vld [vmem:[%s1 + $0x14] sm:$0x3]
    %v27 = vld [vmem:[%s1 + $0x16] sm:$0x3]
    %v28 = vld [vmem:[%s1 + $0x18] sm:$0x3]
    %v29 = vld [vmem:[%s1 + $0x1a] sm:$0x3]
    %v30 = vld [vmem:[%s1 + $0x1c] sm:$0x3]
    %v31 = vld [vmem:[%s1 + $0x1e] sm:$0x3]
    %v32 = vld [vmem:[%s1 + $0x20] sm:$0x3]
    %v33 = vld [vmem:[%s1 + $0x22] sm:$0x3]
    %v34 = vld [vmem:[%s1 + $0x24] sm:$0x3]
    %v35 = vld [vmem:[%s1 + $0x26] sm:$0x3]
    %v36 = vld [vmem:[%s1 + $0x28] sm:$0x3]
    %v37 = vld [vmem:[%s1 + $0x2a] sm:$0x3]
    %v38 = vld [vmem:[%s1 + $0x2c] sm:$0x3]
    %v39 = vld [vmem:[%s1 + $0x2e] sm:$0x3]
    %v40 = vld [vmem:[%s1 + $0x30] sm:$0x3]
    %v41 = vld [vmem:[%s1 + $0x32] sm:$0x3]
    %v42 = vld [vmem:[%s1 + $0x34] sm:$0x3]
    %v43 = vld [vmem:[%s1 + $0x36] sm:$0x3]
    %v44 = vld [vmem:[%s1 + $0x38] sm:$0x3]
    %v45 = vld [vmem:[%s1 + $0x3a] sm:$0x3]
    %v46 = vld [vmem:[%s1 + $0x3c] sm:$0x3]
    %v47 = vld [vmem:[%s1 + $0x3e] sm:$0x3]
    %v48 = vld [vmem:[%s1 + $0x40] sm:$0x3]
    %v49 = vld [vmem:[%s1 + $0x42] sm:$0x3]
    %v50 = vld [vmem:[%s1 + $0x44] sm:$0x3]
    %v51 = vld [vmem:[%s1 + $0x46] sm:$0x3]
    %v52 = vld [vmem:[%s1 + $0x48] sm:$0x3]
    %v53 = vld [vmem:[%s1 + $0x4a] sm:$0x3]
    %v54 = vld [vmem:[%s1 + $0x4c] sm:$0x3]
    %v55 = vld [vmem:[%s1 + $0x4e] sm:$0x3]
    %v56 = vld [vmem:[%s1 + $0x50] sm:$0x3]
    %v57 = vld [vmem:[%s1 + $0x52] sm:$0x3]
    %v58 = vld [vmem:[%s1 + $0x54] sm:$0x3]
    %v59 = vld [vmem:[%s1 + $0x56] sm:$0x3]
    %v60 = vld [vmem:[%s1 + $0x58] sm:$0x3]
    %v61 = vld [vmem:[%s1 + $0x5a] sm:$0x3]
    %v62 = vld [vmem:[%s1 + $0x5c] sm:$0x3]
    %v63 = vld [vmem:[%s1 + $0x5e] sm:$0x3]
    %v64 = vld [vmem:[%s1 + $0x60] sm:$0x3]
    %v65 = vld [vmem:[%s1 + $0x62] sm:$0x3]
    %v66 = vunpack.c.l.s8.bf16 %v16
    %v67 = vunpack.c.l.s8.bf16 %v17
    %v68 = vunpack.c.l.s8.bf16 %v18
    %v69 = vunpack.c.l.s8.bf16 %v19
    %v70 = vunpack.c.l.s8.bf16 %v20
    %v71 = vunpack.c.l.s8.bf16 %v21
    %v72 = vunpack.c.l.s8.bf16 %v22
    %v73 = vunpack.c.l.s8.bf16 %v23
    %v74 = vunpack.c.l.s8.bf16 %v24
    %v75 = vunpack.c.l.s8.bf16 %v25
    %v76 = vunpack.c.l.s8.bf16 %v26
    %v77 = vunpack.c.l.s8.bf16 %v27
    %v78 = vunpack.c.l.s8.bf16 %v28
    %v79 = vunpack.c.l.s8.bf16 %v29
    %v80 = vunpack.c.l.s8.bf16 %v30
    %v81 = vunpack.c.l.s8.bf16 %v31
    %v82 = vunpack.c.l.s8.bf16 %v32
    %v83 = vunpack.c.l.s8.bf16 %v33
    %v84 = vunpack.c.l.s8.bf16 %v34
    %v85 = vunpack.c.l.s8.bf16 %v35
    %v86 = vunpack.c.l.s8.bf16 %v36
    %v87 = vunpack.c.l.s8.bf16 %v37
    %v88 = vunpack.c.l.s8.bf16 %v38
    %v89 = vunpack.c.l.s8.bf16 %v39
    %v90 = vunpack.c.l.s8.bf16 %v40
    %v91 = vunpack.c.l.s8.bf16 %v41
    %v92 = vunpack.c.l.s8.bf16 %v42
    %v93 = vunpack.c.l.s8.bf16 %v43
    %v94 = vunpack.c.l.s8.bf16 %v44
    %v95 = vunpack.c.l.s8.bf16 %v45
    %v96 = vunpack.c.l.s8.bf16 %v46
    %v97 = vunpack.c.l.s8.bf16 %v47
    %v98 = vunpack.c.l.s8.bf16 %v48
    %v99 = vunpack.c.l.s8.bf16 %v49
    %v100 = vunpack.c.l.s8.bf16 %v50
    %v101 = vunpack.c.l.s8.bf16 %v51
    %v102 = vunpack.c.l.s8.bf16 %v52
    %v103 = vunpack.c.l.s8.bf16 %v53
    %v104 = vunpack.c.l.s8.bf16 %v54
    %v105 = vunpack.c.l.s8.bf16 %v55
    %v106 = vunpack.c.l.s8.bf16 %v56
    %v107 = vunpack.c.l.s8.bf16 %v57
    %v108 = vunpack.c.l.s8.bf16 %v58
    %v109 = vunpack.c.l.s8.bf16 %v59
    %v110 = vunpack.c.l.s8.bf16 %v60
    %v111 = vunpack.c.l.s8.bf16 %v61
    %v112 = vunpack.c.l.s8.bf16 %v62
    %v113 = vunpack.c.l.s8.bf16 %v63
    %v114 = vunpack.c.l.s8.bf16 %v64
    %v115 = vunpack.c.l.s8.bf16 %v65
    %v116 = vld [vmem:[%s0] sm:$0xff]
    %v117 = vld [vmem:[%s0 + $0x8] sm:$0xff]
    %v120 = vunpack.c.l.b16 %v116
    %v121 = vunpack.c.h.b16 %v116
    %v122 = vunpack.c.l.b16 %v117
    %v123 = vunpack.c.h.b16 %v117
    %v124 = vpack.c.b16 %v120, %v120
    %v125 = vpack.c.b16 %v121, %v121
    %v126 = vpack.c.b16 %v122, %v122
    %v127 = vpack.c.b16 %v123, %v123
    %v181 = vunpack.c.l.b16 %v66
    %v182 = vunpack.c.l.b16 %v67
    %v183 = vunpack.c.l.b16 %v68
    %v184 = vunpack.c.l.b16 %v69
    %v185 = vunpack.c.l.b16 %v70
    %v186 = vunpack.c.l.b16 %v71
    %v187 = vunpack.c.l.b16 %v72
    %v188 = vunpack.c.l.b16 %v73
    %v189 = vunpack.c.l.b16 %v74
    %v190 = vunpack.c.l.b16 %v75
    %v191 = vunpack.c.l.b16 %v76
    %v192 = vunpack.c.l.b16 %v77
    %v193 = vunpack.c.l.b16 %v78
    %v194 = vunpack.c.l.b16 %v79
    %v195 = vunpack.c.l.b16 %v80
    %v196 = vunpack.c.l.b16 %v81
    %v197 = vunpack.c.l.b16 %v82
    %v198 = vunpack.c.l.b16 %v83
    %v199 = vunpack.c.l.b16 %v84
    %v200 = vunpack.c.l.b16 %v85
    %v201 = vunpack.c.l.b16 %v86
    %v202 = vunpack.c.l.b16 %v87
    %v203 = vunpack.c.l.b16 %v88
    %v204 = vunpack.c.l.b16 %v89
    %v205 = vunpack.c.l.b16 %v90
    %v206 = vunpack.c.l.b16 %v91
    %v207 = vunpack.c.l.b16 %v92
    %v208 = vunpack.c.l.b16 %v93
    %v209 = vunpack.c.l.b16 %v94
    %v210 = vunpack.c.l.b16 %v95
    %v211 = vunpack.c.l.b16 %v96
    %v212 = vunpack.c.l.b16 %v97
    %v213 = vunpack.c.l.b16 %v98
    %v214 = vunpack.c.l.b16 %v99
    %v215 = vunpack.c.l.b16 %v100
    %v216 = vunpack.c.l.b16 %v101
    %v217 = vunpack.c.l.b16 %v102
    %v218 = vunpack.c.l.b16 %v103
    %v219 = vunpack.c.l.b16 %v104
    %v220 = vunpack.c.l.b16 %v105
    %v221 = vunpack.c.l.b16 %v106
    %v222 = vunpack.c.l.b16 %v107
    %v223 = vunpack.c.l.b16 %v108
    %v224 = vunpack.c.l.b16 %v109
    %v225 = vunpack.c.l.b16 %v110
    %v226 = vunpack.c.l.b16 %v111
    %v227 = vunpack.c.l.b16 %v112
    %v228 = vunpack.c.l.b16 %v113
    %v229 = vunpack.c.l.b16 %v114
    %v230 = vunpack.c.l.b16 %v115
    %v231 = vpack.c.b16 %v182, %v181
    %v232 = vpack.c.b16 %v184, %v183
    %v233 = vpack.c.b16 %v186, %v185
    %v234 = vpack.c.b16 %v188, %v187
    %v235 = vpack.c.b16 %v190, %v189
    %v236 = vpack.c.b16 %v192, %v191
    %v237 = vpack.c.b16 %v194, %v193
    %v238 = vpack.c.b16 %v196, %v195
    %v239 = vpack.c.b16 %v198, %v197
    %v240 = vpack.c.b16 %v200, %v199
    %v241 = vpack.c.b16 %v202, %v201
    %v242 = vpack.c.b16 %v204, %v203
    %v243 = vpack.c.b16 %v206, %v205
    %v244 = vpack.c.b16 %v208, %v207
    %v245 = vpack.c.b16 %v210, %v209
    %v246 = vpack.c.b16 %v212, %v211
    %v247 = vpack.c.b16 %v214, %v213
    %v248 = vpack.c.b16 %v216, %v215
    %v249 = vpack.c.b16 %v218, %v217
    %v250 = vpack.c.b16 %v220, %v219
    %v251 = vpack.c.b16 %v222, %v221
    %v252 = vpack.c.b16 %v224, %v223
    %v253 = vpack.c.b16 %v226, %v225
    %v254 = vpack.c.b16 %v228, %v227
    %v255 = vpack.c.b16 %v230, %v229
    %vm281 = vcmask 130048
    %v283 = vsel %vm281, %v127, 0
    %285 = vmatprep.subr.bf16.mxu0 0
    %286 = vmatpush1.bf16.msra.mxu0 %v238
    %287 = vmatprep.subr.bf16.mxu0 0
    %288 = vmatpush1.bf16.msra.mxu0 %v237
    %289 = vmatprep.subr.bf16.mxu0 0
    %290 = vmatpush1.bf16.msra.mxu0 %v236
    %291 = vmatprep.subr.bf16.mxu0 0
    %292 = vmatpush1.bf16.msra.mxu0 %v235
    %293 = vmatprep.subr.bf16.mxu0 0
    %294 = vmatpush1.bf16.msra.mxu0 %v234
    %295 = vmatprep.subr.bf16.mxu0 0
    %296 = vmatpush1.bf16.msra.mxu0 %v233
    %297 = vmatprep.subr.bf16.mxu0 0
    %298 = vmatpush1.bf16.msra.mxu0 %v232
    %299 = vmatprep.subr.bf16.mxu0 0
    %300 = vmatpush1.bf16.msra.mxu0 %v231
    %301 = vmatprep.subr.bf16.mxu0 0
    %302 = vmatpush2.bf16.msra.mxu0 %v246
    %303 = vmatprep.subr.bf16.mxu0 0
    %304 = vmatpush2.bf16.msra.mxu0 %v245
    %305 = vmatprep.subr.bf16.mxu0 0
    %306 = vmatpush2.bf16.msra.mxu0 %v244
    %307 = vmatprep.subr.bf16.mxu0 0
    %308 = vmatpush2.bf16.msra.mxu0 %v243
    %309 = vmatprep.subr.bf16.mxu0 0
    %310 = vmatpush2.bf16.msra.mxu0 %v242
    %311 = vmatprep.subr.bf16.mxu0 0
    %312 = vmatpush2.bf16.msra.mxu0 %v241
    %313 = vmatprep.subr.bf16.mxu0 0
    %314 = vmatpush2.bf16.msra.mxu0 %v240
    %315 = vmatprep.subr.bf16.mxu0 0
    %316 = vmatpush2.bf16.msra.mxu0 %v239
    %317 = vmatprep.mubr.bf16.mxu0 %v125
    %318 = vmatmul.mubr.bf16.gmra.mxu0 %v124
    %v319 = vpop.f32.mrf.mxu0
    %v320 = vadd.f32 0.0, %v319
    %v321 = vpop.f32.mrf.mxu0
    %v322 = vpop.f32.mrf.mxu0
    %v323 = vpop.f32.mrf.mxu0
    %324 = vdwg.mxu0
    %325 = vmatprep.subr.bf16.mxu0 0
    %326 = vmatpush1.bf16.msra.mxu0 %v254
    %327 = vmatprep.subr.bf16.mxu0 0
    %328 = vmatpush1.bf16.msra.mxu0 %v253
    %329 = vmatprep.subr.bf16.mxu0 0
    %330 = vmatpush1.bf16.msra.mxu0 %v252
    %331 = vmatprep.subr.bf16.mxu0 0
    %332 = vmatpush1.bf16.msra.mxu0 %v251
    %333 = vmatprep.subr.bf16.mxu0 0
    %334 = vmatpush1.bf16.msra.mxu0 %v250
    %335 = vmatprep.subr.bf16.mxu0 0
    %336 = vmatpush1.bf16.msra.mxu0 %v249
    %337 = vmatprep.subr.bf16.mxu0 0
    %338 = vmatpush1.bf16.msra.mxu0 %v248
    %339 = vmatprep.subr.bf16.mxu0 0
    %340 = vmatpush1.bf16.msra.mxu0 %v247
    %341 = vmatprep.subr.bf16.mxu0 0
    %342 = vmatpush2.bf16.msra.mxu0 0
    %343 = vmatprep.subr.bf16.mxu0 0
    %344 = vmatpush2.bf16.msra.mxu0 0
    %345 = vmatprep.subr.bf16.mxu0 0
    %346 = vmatpush2.bf16.msra.mxu0 0
    %347 = vmatprep.subr.bf16.mxu0 0
    %348 = vmatpush2.bf16.msra.mxu0 0
    %349 = vmatprep.subr.bf16.mxu0 0
    %350 = vmatpush2.bf16.msra.mxu0 0
    %351 = vmatprep.subr.bf16.mxu0 0
    %352 = vmatpush2.bf16.msra.mxu0 0
    %353 = vmatprep.subr.bf16.mxu0 0
    %354 = vmatpush2.bf16.msra.mxu0 0
    %355 = vmatprep.subr.bf16.mxu0 0
    %356 = vmatpush2.bf16.msra.mxu0 %v255
    %357 = vmatprep.mubr.bf16.mxu0 %v283
    %358 = vmatmul.mubr.bf16.gmra.mxu0 %v126
    %v359 = vpop.f32.mrf.mxu0
    %v360 = vadd.f32 %v320, %v359
    %v361 = vpop.f32.mrf.mxu0
    %v362 = vpop.f32.mrf.mxu0
    %v363 = vpop.f32.mrf.mxu0
    %364 = vdwg.mxu0
    %v365 = vld [vmem:[%s2] sm:$0x1]
    %v367 = vlaneseq
    %v368 = vshrl.u32 %v367, 7
    %v369 = vsub.s32 0, %v368
    %v370 = vrot.slane %v365, %v369
    %v372 = vmul.f32 %v360, %v370
    %v373 = vsub.f32 0.0, %v372
    %v374 = vmul.f32 %v373, 1.442695
    %v375 = vpow.pop %v374
    %v376 = vadd.f32 %v375, 1.0
    %v377 = vrcp.pop %v376
    %vm378 = vcmask 523264
    %379 = vst.msk [vmem:[#allocation2] sm:$0xff] %vm378, %v377
    // Predicated region
    $region14: #{tpu_custom_call.1} parent=1 // pred_check
      _
    $region15: #{tpu_custom_call.1} parent=1 // pred_check_branch
      %381 = sbr.rel (0) target = $region17
    $region16: #{tpu_custom_call.1} parent=1 // pred_region
      %s383 = ssub.s32 128, 128
      %384 = vsyncadd [#allocation3], %s383
      %s386 = sshll.u32 [#allocation2], 4
      %s387 = int_to_ptr.vmem [resolvable:$true] %s386
      %389 = dma.vmem_to_hbm [thread:$0]  %s387, 128, %s3, [#allocation3]
    $region17: #{tpu_custom_call.1} parent=1 // pred_fallthru
      _
    // Predicated region
    $region18: #{tpu_custom_call.1} parent=1 // pred_check
      _
    $region19: #{tpu_custom_call.1} parent=1 // pred_check_branch
      %391 = sbr.rel (0) target = $region21
    $region20: #{tpu_custom_call.1} parent=1 // pred_region
      %392 = dma.done [#allocation3], 128
    $region21: #{tpu_custom_call.1} parent=1 // pred_fallthru
      _
    %393 = vsyncpa [#allocation3], 1

</llo_original>
